<compile_context>
chip_gen: v5e
topology: v5e:2x2
jax: 0.10.0
libtpu: 0.0.40
codegen_flags: <defaults>
</compile_context>

<pallas_src>
import jax
import jax.numpy as jnp
from jax.experimental import pallas as pl
from jax.experimental.pallas import tpu as pltpu


# ----------------------------------------------------------------------------
# Recurrence kernel: time chunks pipelined, h/c persistent in VMEM scratch,
# final Linear fused into the last chunk.  One batch block per "parallel"
# grid index (v7x: 2 TCs split the batch when NB >= 2).
# ----------------------------------------------------------------------------
def lstm_recurrence_kernel(len_smem, len_ref, xw_ref, whh_ref, wlin_ref,
                           blin_ref, out_ref, h_sc, c_sc):
    b = pl.program_id(0)
    tc = pl.program_id(1)
    n_tc = pl.num_programs(1)
    T_CHUNK, BB, _ = xw_ref.shape        # static
    H = whh_ref.shape[0]

    @pl.when(tc == 0)
    def _():
        h_sc[...] = jnp.zeros_like(h_sc)
        c_sc[...] = jnp.zeros_like(c_sc)

    chunk_start = tc * T_CHUNK
    # lengths are sorted descending (pack_padded_sequence requirement), so the
    # first row of this batch block holds the block maximum -> skip dead chunks.
    max_len = len_smem[b * BB]

    @pl.when(chunk_start < max_len)
    def _():
        lens = len_ref[...]              # (BB, 1) int32 -- loaded once
        whh = whh_ref[...]               # (H, 4H)       -- loaded once

        def step(t, carry):
            h, c = carry
            # Fused gates: x-path precomputed (bias folded in); only the
            # (BB, H) x (H, 4H=128) matmul stays on the serial critical path.
            gates = xw_ref[t] + jnp.dot(h, whh,
                                        preferred_element_type=jnp.float32)
            # One lane-dense sigmoid over the full (BB, 4H) tensor, slice
            # i|f|o from it; one tanh for g.  PyTorch gate order: i, f, g, o.
            sg = jax.nn.sigmoid(gates)
            i_g = sg[:, 0 * H:1 * H]
            f_g = sg[:, 1 * H:2 * H]
            o_g = sg[:, 3 * H:4 * H]
            g_g = jnp.tanh(gates[:, 2 * H:3 * H])
            c_new = f_g * c + i_g * g_g
            h_new = o_g * jnp.tanh(c_new)
            # pack_padded_sequence semantics: freeze h/c past each row's end.
            m = (chunk_start + t) < lens                  # (BB, 1) bool
            return jnp.where(m, h_new, h), jnp.where(m, c_new, c)

        h_fin, c_fin = jax.lax.fori_loop(
            0, T_CHUNK, step, (h_sc[...], c_sc[...]),
            unroll=min(8, T_CHUNK))      # bounded unroll: serial dep, no ILP past ~8
        h_sc[...] = h_fin
        c_sc[...] = c_fin

    @pl.when(tc == n_tc - 1)
    def _():
        # Final Linear on the carried hidden state; lane-dense (BB, 128) store.
        out_ref[...] = (jnp.dot(h_sc[...], wlin_ref[...],
                                preferred_element_type=jnp.float32)
                        + blin_ref[...])


# ----------------------------------------------------------------------------
# Wrapper
# ----------------------------------------------------------------------------
def lstm_classifier_forward(inputs, lengths, params, n_classes):
    emb = params["embedding"]                       # (V, E)
    T, B = inputs.shape
    E = emb.shape[1]
    H = E
    C_pad = params["w_lin"].shape[1]                # lane-padded classes (128)

    # --- tiling ---------------------------------------------------------
    BB = min(128, ((B + 7) // 8) * 8)               # sublane-aligned batch block
    B_pad = ((B + BB - 1) // BB) * BB
    NB = B_pad // BB                                # v7x: keep NB >= 2 if possible
    # Size the xw time chunk so the double-buffered (T_CHUNK, BB, 4H) block
    # stays ~<=8 MiB total (fits v5e's 16 MiB default scoped VMEM and leaves
    # plenty of headroom on v7x's 64 MiB).
    bytes_per_step = BB * 4 * H * 4
    T_CHUNK = max(1, min(T, (4 << 20) // bytes_per_step))
    T_pad = ((T + T_CHUNK - 1) // T_CHUNK) * T_CHUNK
    N_TC = T_pad // T_CHUNK

    # --- glue: project the vocab table once (V rows, not T*B), then gather ---
    # xw[t, b] = emb[inputs[t, b]] @ W_ih^T + (b_ih + b_hh)
    proj = jnp.dot(emb, params["w_ih"],
                   preferred_element_type=jnp.float32) + params["b"]  # (V, 4H)
    xw = jnp.take(proj, inputs, axis=0)                               # (T, B, 4H)
    xw = jnp.pad(xw, ((0, T_pad - T), (0, B_pad - B), (0, 0)))
    lengths_p = jnp.pad(lengths.astype(jnp.int32), (0, B_pad - B))    # pads = 0 => inert rows
    lengths2d = lengths_p[:, None]                                    # (B_pad, 1)

    out_pad = pl.pallas_call(
        lstm_recurrence_kernel,
        out_shape=jax.ShapeDtypeStruct((B_pad, C_pad), jnp.float32),
        grid_spec=pltpu.PrefetchScalarGridSpec(
            num_scalar_prefetch=1,                  # lengths -> SMEM (chunk skip)
            grid=(NB, N_TC),                        # batch blocks, time chunks
            in_specs=[
                pl.BlockSpec((BB, 1), lambda b, t, lens: (b, 0)),            # lengths
                pl.BlockSpec((T_CHUNK, BB, 4 * H), lambda b, t, lens: (t, b, 0)),  # xW
                pl.BlockSpec((H, 4 * H), lambda b, t, lens: (0, 0)),         # W_hh_all
                pl.BlockSpec((H, C_pad), lambda b, t, lens: (0, 0)),         # W_lin^T pad
                pl.BlockSpec((1, C_pad), lambda b, t, lens: (0, 0)),         # b_lin pad
            ],
            out_specs=pl.BlockSpec((BB, C_pad), lambda b, t, lens: (b, 0)),
            scratch_shapes=[pltpu.VMEM((BB, H), jnp.float32),   # h carry
                            pltpu.VMEM((BB, H), jnp.float32)],  # c carry
        ),
        compiler_params=pltpu.CompilerParams(
            dimension_semantics=("parallel", "arbitrary")),
    )(lengths_p, lengths2d, xw, params["w_hh"], params["w_lin"],
      params["b_lin"])

    return out_pad[:B, :n_classes]


# ----------------------------------------------------------------------------
# Parameters (PyTorch convention -> kernel-friendly fused layouts)
# ----------------------------------------------------------------------------
def make_params(key, vocab, embed_dim, n_classes):
    E = H = embed_dim
    ks = jax.random.split(key, 7)
    embedding = jax.random.normal(ks[0], (vocab, E), jnp.float32) * 0.1

    # nn.LSTM(E, E): weight_ih_l0 (4H, E), weight_hh_l0 (4H, H), biases (4H,)
    W_ih = jax.random.normal(ks[1], (4 * H, E), jnp.float32) * 0.1
    W_hh = jax.random.normal(ks[2], (4 * H, H), jnp.float32) * 0.1
    b_ih = jax.random.normal(ks[3], (4 * H,), jnp.float32) * 0.1
    b_hh = jax.random.normal(ks[4], (4 * H,), jnp.float32) * 0.1

    # nn.Linear(E, n_classes): weight (C, E), bias (C,)
    W_lin = jax.random.normal(ks[5], (n_classes, H), jnp.float32) * 0.1
    b_lin = jax.random.normal(ks[6], (n_classes,), jnp.float32) * 0.1

    # Fused, transposed layouts: gate columns ordered i|f|g|o, 4H = 128 lanes.
    C_pad = max(128, ((n_classes + 127) // 128) * 128)
    w_lin_pad = jnp.zeros((H, C_pad), jnp.float32).at[:, :n_classes].set(W_lin.T)
    b_lin_pad = jnp.zeros((1, C_pad), jnp.float32).at[:, :n_classes].set(b_lin)

    params = dict(
        embedding=embedding,
        w_ih=W_ih.T,                        # (E, 4H)
        w_hh=W_hh.T,                        # (H, 4H)
        b=(b_ih + b_hh)[None, :],           # (1, 4H)
        w_lin=w_lin_pad,                    # (H, C_pad)
        b_lin=b_lin_pad,                    # (1, C_pad)
    )
    torch_params = dict(embedding=embedding, W_ih=W_ih, W_hh=W_hh,
                        b_ih=b_ih, b_hh=b_hh, W_lin=W_lin, b_lin=b_lin)
    return params, torch_params


# ----------------------------------------------------------------------------
# Pure-JAX reference matching torch packed-sequence LSTM semantics
# ----------------------------------------------------------------------------
def reference_forward(inputs, lengths, p):
    x = jnp.take(p["embedding"], inputs, axis=0)    # (T, B, E)
    T, B, E = x.shape
    H = E

    def step(carry, xt_t):
        h, c = carry
        xt, t = xt_t
        gates = xt @ p["W_ih"].T + p["b_ih"] + h @ p["W_hh"].T + p["b_hh"]
        i = jax.nn.sigmoid(gates[:, 0 * H:1 * H])
        f = jax.nn.sigmoid(gates[:, 1 * H:2 * H])
        g = jnp.tanh(gates[:, 2 * H:3 * H])
        o = jax.nn.sigmoid(gates[:, 3 * H:4 * H])
        c_new = f * c + i * g
        h_new = o * jnp.tanh(c_new)
        m = (t < lengths)[:, None].astype(x.dtype)
        return (m * h_new + (1 - m) * h, m * c_new + (1 - m) * c), None

    init = (jnp.zeros((B, H), jnp.float32), jnp.zeros((B, H), jnp.float32))
    (h, _), _ = jax.lax.scan(step, init, (x, jnp.arange(T)))
    return h @ p["W_lin"].T + p["b_lin"]


if __name__ == "__main__":
    VOCAB, EMBED_DIM, N_CLASSES = 50, 32, 20
    T, B = 8, 2

    key = jax.random.PRNGKey(0)
    k_param, k_tok = jax.random.split(key)
    params, torch_params = make_params(k_param, VOCAB, EMBED_DIM, N_CLASSES)

    inputs = jax.random.randint(k_tok, (T, B), 0, VOCAB, jnp.int32)   # (T, B)
    lengths = jnp.array([8, 5], jnp.int32)   # sorted desc, like pack_padded_sequence

    logits = lstm_classifier_forward(inputs, lengths, params, N_CLASSES)
    logits = jax.block_until_ready(logits)

    ref = reference_forward(inputs, lengths, torch_params)
    assert logits.shape == (B, N_CLASSES)
    assert jnp.allclose(logits, ref, rtol=1e-4, atol=1e-4), (logits, ref)

    print("KERNEL_OK")
</pallas_src>

<mosaic_0001>
module attributes {stable_mosaic.version = 11 : i64} {
  func.func @lstm_recurrence_kernel(%arg0: i32, %arg1: i32, %arg2: memref<8xi32, #tpu.memory_space<smem>>, %arg3: memref<8x1xi32, #tpu.memory_space<vmem>>, %arg4: memref<8x8x128xf32, #tpu.memory_space<vmem>>, %arg5: memref<32x128xf32, #tpu.memory_space<vmem>>, %arg6: memref<32x128xf32, #tpu.memory_space<vmem>>, %arg7: memref<1x128xf32, #tpu.memory_space<vmem>>, %arg8: memref<8x128xf32, #tpu.memory_space<vmem>>, %arg9: memref<8x32xf32, #tpu.memory_space<vmem>>, %arg10: memref<8x32xf32, #tpu.memory_space<vmem>>) attributes {dimension_semantics = [#tpu.dimension_semantics<parallel>, #tpu.dimension_semantics<arbitrary>], iteration_bounds = array<i64: 1, 1>, scalar_prefetch = 1 : i64, scratch_operands = 2 : i64, tpu.core_type = #tpu.core_type<tc>, window_params = [{transform_indices = @transform_0, window_bounds = array<i64: 8, 1>}, {transform_indices = @transform_1, window_bounds = array<i64: 8, 8, 128>}, {pipeline_mode = #tpu.pipeline_mode<synchronous>, transform_indices = @transform_2, window_bounds = array<i64: 32, 128>}, {pipeline_mode = #tpu.pipeline_mode<synchronous>, transform_indices = @transform_3, window_bounds = array<i64: 32, 128>}, {pipeline_mode = #tpu.pipeline_mode<synchronous>, transform_indices = @transform_4, window_bounds = array<i64: 1, 128>}, {transform_indices = @transform_5, window_bounds = array<i64: 8, 128>}]} {
    %c0_i32 = arith.constant 0 : i32
    %0 = arith.cmpi eq, %arg1, %c0_i32 : i32
    %1 = arith.extui %0 : i1 to i32
    %c0_i32_0 = arith.constant 0 : i32
    %2 = arith.cmpi ne, %1, %c0_i32_0 : i32
    scf.if %2 {
      %cst = arith.constant 0.000000e+00 : f32
      %13 = vector.broadcast %cst : f32 to vector<8x32xf32>
      %c0 = arith.constant 0 : index
      %c0_5 = arith.constant 0 : index
      %14 = vector.load %arg9[%c0, %c0_5] : memref<8x32xf32, #tpu.memory_space<vmem>>, vector<8x32xf32>
      tpu.vector_store %arg9[%c0, %c0_5], %13 {strides = array<i32>} : memref<8x32xf32, #tpu.memory_space<vmem>>, vector<8x32xf32>,
      %cst_6 = arith.constant 0.000000e+00 : f32
      %15 = vector.broadcast %cst_6 : f32 to vector<8x32xf32>
      %c0_7 = arith.constant 0 : index
      %c0_8 = arith.constant 0 : index
      %16 = vector.load %arg10[%c0_7, %c0_8] : memref<8x32xf32, #tpu.memory_space<vmem>>, vector<8x32xf32>
      tpu.vector_store %arg10[%c0_7, %c0_8], %15 {strides = array<i32>} : memref<8x32xf32, #tpu.memory_space<vmem>>, vector<8x32xf32>,
    } else {
    }
    %c8_i32 = arith.constant 8 : i32
    %3 = arith.muli %arg1, %c8_i32 : i32
    %c8_i32_1 = arith.constant 8 : i32
    %4 = arith.muli %arg0, %c8_i32_1 : i32
    %5 = arith.index_cast %4 : i32 to index
    %6 = memref.load %arg2[%5] : memref<8xi32, #tpu.memory_space<smem>>
    %7 = arith.cmpi slt, %3, %6 : i32
    %8 = arith.extui %7 : i1 to i32
    %c0_i32_2 = arith.constant 0 : i32
    %9 = arith.cmpi ne, %8, %c0_i32_2 : i32
    scf.if %9 {
      %c0 = arith.constant 0 : index
      %c0_5 = arith.constant 0 : index
      %13 = vector.load %arg3[%c0, %c0_5] : memref<8x1xi32, #tpu.memory_space<vmem>>, vector<8x1xi32>
      %c0_6 = arith.constant 0 : index
      %c0_7 = arith.constant 0 : index
      %14 = vector.load %arg5[%c0_6, %c0_7] : memref<32x128xf32, #tpu.memory_space<vmem>>, vector<32x128xf32>
      %c0_8 = arith.constant 0 : index
      %c0_9 = arith.constant 0 : index
      %15 = vector.load %arg9[%c0_8, %c0_9] : memref<8x32xf32, #tpu.memory_space<vmem>>, vector<8x32xf32>
      %c0_10 = arith.constant 0 : index
      %c0_11 = arith.constant 0 : index
      %16 = vector.load %arg10[%c0_10, %c0_11] : memref<8x32xf32, #tpu.memory_space<vmem>>, vector<8x32xf32>
      %c0_i32_12 = arith.constant 0 : i32
      %17 = arith.index_cast %c0_i32_12 : i32 to index
      %c0_13 = arith.constant 0 : index
      %c0_14 = arith.constant 0 : index
      %18 = vector.load %arg4[%17, %c0_13, %c0_14] : memref<8x8x128xf32, #tpu.memory_space<vmem>>, vector<1x8x128xf32>
      %19 = vector.shape_cast %18 : vector<1x8x128xf32> to vector<8x128xf32>
      %cst = arith.constant dense<0.000000e+00> : vector<8x128xf32>
      %20 = tpu.matmul %15, %14, %cst {dimension_numbers = #tpu.dot_dimension_numbers<[1], [0], [0], [1], [0, 0, 1, 1], [], []>} : vector<8x32xf32>, vector<32x128xf32>, vector<8x128xf32> -> vector<8x128xf32>
      %21 = arith.addf %19, %20 : vector<8x128xf32>
      %22 = arith.negf %21 : vector<8x128xf32>
      %23 = math.exp %22 : vector<8x128xf32>
      %cst_15 = arith.constant 1.000000e+00 : f32
      %24 = vector.broadcast %cst_15 : f32 to vector<8x128xf32>
      %25 = arith.addf %24, %23 : vector<8x128xf32>
      %26 = arith.divf %24, %25 : vector<8x128xf32>
      %27 = vector.extract_strided_slice %26 {offsets = [0, 0], sizes = [8, 32], strides = [1, 1]} : vector<8x128xf32> to vector<8x32xf32>
      %28 = vector.extract_strided_slice %26 {offsets = [0, 32], sizes = [8, 32], strides = [1, 1]} : vector<8x128xf32> to vector<8x32xf32>
      %29 = vector.extract_strided_slice %26 {offsets = [0, 96], sizes = [8, 32], strides = [1, 1]} : vector<8x128xf32> to vector<8x32xf32>
      %30 = vector.extract_strided_slice %21 {offsets = [0, 64], sizes = [8, 32], strides = [1, 1]} : vector<8x128xf32> to vector<8x32xf32>
      %31 = math.tanh %30 : vector<8x32xf32>
      %32 = arith.mulf %28, %16 : vector<8x32xf32>
      %33 = arith.mulf %27, %31 : vector<8x32xf32>
      %34 = arith.addf %32, %33 : vector<8x32xf32>
      %35 = math.tanh %34 : vector<8x32xf32>
      %36 = arith.mulf %29, %35 : vector<8x32xf32>
      %37 = arith.addi %3, %c0_i32_12 : i32
      %38 = vector.broadcast %37 : i32 to vector<8x1xi32>
      %39 = arith.cmpi slt, %38, %13 : vector<8x1xi32>
      %40 = vector.shape_cast %39 : vector<8x1xi1> to vector<8x1xi1>
      %41 = vector.broadcast %40 : vector<8x1xi1> to vector<8x32xi1>
      %42 = arith.select %41, %36, %15 : vector<8x32xi1>, vector<8x32xf32>
      %43 = vector.shape_cast %39 : vector<8x1xi1> to vector<8x1xi1>
      %44 = vector.broadcast %43 : vector<8x1xi1> to vector<8x32xi1>
      %45 = arith.select %44, %34, %16 : vector<8x32xi1>, vector<8x32xf32>
      %c1_i32 = arith.constant 1 : i32
      %46 = arith.index_cast %c1_i32 : i32 to index
      %c0_16 = arith.constant 0 : index
      %c0_17 = arith.constant 0 : index
      %47 = vector.load %arg4[%46, %c0_16, %c0_17] : memref<8x8x128xf32, #tpu.memory_space<vmem>>, vector<1x8x128xf32>
      %48 = vector.shape_cast %47 : vector<1x8x128xf32> to vector<8x128xf32>
      %cst_18 = arith.constant dense<0.000000e+00> : vector<8x128xf32>
      %49 = tpu.matmul %42, %14, %cst_18 {dimension_numbers = #tpu.dot_dimension_numbers<[1], [0], [0], [1], [0, 0, 1, 1], [], []>} : vector<8x32xf32>, vector<32x128xf32>, vector<8x128xf32> -> vector<8x128xf32>
      %50 = arith.addf %48, %49 : vector<8x128xf32>
      %51 = arith.negf %50 : vector<8x128xf32>
      %52 = math.exp %51 : vector<8x128xf32>
      %cst_19 = arith.constant 1.000000e+00 : f32
      %53 = vector.broadcast %cst_19 : f32 to vector<8x128xf32>
      %54 = arith.addf %53, %52 : vector<8x128xf32>
      %55 = arith.divf %53, %54 : vector<8x128xf32>
      %56 = vector.extract_strided_slice %55 {offsets = [0, 0], sizes = [8, 32], strides = [1, 1]} : vector<8x128xf32> to vector<8x32xf32>
      %57 = vector.extract_strided_slice %55 {offsets = [0, 32], sizes = [8, 32], strides = [1, 1]} : vector<8x128xf32> to vector<8x32xf32>
      %58 = vector.extract_strided_slice %55 {offsets = [0, 96], sizes = [8, 32], strides = [1, 1]} : vector<8x128xf32> to vector<8x32xf32>
      %59 = vector.extract_strided_slice %50 {offsets = [0, 64], sizes = [8, 32], strides = [1, 1]} : vector<8x128xf32> to vector<8x32xf32>
      %60 = math.tanh %59 : vector<8x32xf32>
      %61 = arith.mulf %57, %45 : vector<8x32xf32>
      %62 = arith.mulf %56, %60 : vector<8x32xf32>
      %63 = arith.addf %61, %62 : vector<8x32xf32>
      %64 = math.tanh %63 : vector<8x32xf32>
      %65 = arith.mulf %58, %64 : vector<8x32xf32>
      %66 = arith.addi %3, %c1_i32 : i32
      %67 = vector.broadcast %66 : i32 to vector<8x1xi32>
      %68 = arith.cmpi slt, %67, %13 : vector<8x1xi32>
      %69 = vector.shape_cast %68 : vector<8x1xi1> to vector<8x1xi1>
      %70 = vector.broadcast %69 : vector<8x1xi1> to vector<8x32xi1>
      %71 = arith.select %70, %65, %42 : vector<8x32xi1>, vector<8x32xf32>
      %72 = vector.shape_cast %68 : vector<8x1xi1> to vector<8x1xi1>
      %73 = vector.broadcast %72 : vector<8x1xi1> to vector<8x32xi1>
      %74 = arith.select %73, %63, %45 : vector<8x32xi1>, vector<8x32xf32>
      %c2_i32 = arith.constant 2 : i32
      %75 = arith.index_cast %c2_i32 : i32 to index
      %c0_20 = arith.constant 0 : index
      %c0_21 = arith.constant 0 : index
      %76 = vector.load %arg4[%75, %c0_20, %c0_21] : memref<8x8x128xf32, #tpu.memory_space<vmem>>, vector<1x8x128xf32>
      %77 = vector.shape_cast %76 : vector<1x8x128xf32> to vector<8x128xf32>
      %cst_22 = arith.constant dense<0.000000e+00> : vector<8x128xf32>
      %78 = tpu.matmul %71, %14, %cst_22 {dimension_numbers = #tpu.dot_dimension_numbers<[1], [0], [0], [1], [0, 0, 1, 1], [], []>} : vector<8x32xf32>, vector<32x128xf32>, vector<8x128xf32> -> vector<8x128xf32>
      %79 = arith.addf %77, %78 : vector<8x128xf32>
      %80 = arith.negf %79 : vector<8x128xf32>
      %81 = math.exp %80 : vector<8x128xf32>
      %cst_23 = arith.constant 1.000000e+00 : f32
      %82 = vector.broadcast %cst_23 : f32 to vector<8x128xf32>
      %83 = arith.addf %82, %81 : vector<8x128xf32>
      %84 = arith.divf %82, %83 : vector<8x128xf32>
      %85 = vector.extract_strided_slice %84 {offsets = [0, 0], sizes = [8, 32], strides = [1, 1]} : vector<8x128xf32> to vector<8x32xf32>
      %86 = vector.extract_strided_slice %84 {offsets = [0, 32], sizes = [8, 32], strides = [1, 1]} : vector<8x128xf32> to vector<8x32xf32>
      %87 = vector.extract_strided_slice %84 {offsets = [0, 96], sizes = [8, 32], strides = [1, 1]} : vector<8x128xf32> to vector<8x32xf32>
      %88 = vector.extract_strided_slice %79 {offsets = [0, 64], sizes = [8, 32], strides = [1, 1]} : vector<8x128xf32> to vector<8x32xf32>
      %89 = math.tanh %88 : vector<8x32xf32>
      %90 = arith.mulf %86, %74 : vector<8x32xf32>
      %91 = arith.mulf %85, %89 : vector<8x32xf32>
      %92 = arith.addf %90, %91 : vector<8x32xf32>
      %93 = math.tanh %92 : vector<8x32xf32>
      %94 = arith.mulf %87, %93 : vector<8x32xf32>
      %95 = arith.addi %3, %c2_i32 : i32
      %96 = vector.broadcast %95 : i32 to vector<8x1xi32>
      %97 = arith.cmpi slt, %96, %13 : vector<8x1xi32>
      %98 = vector.shape_cast %97 : vector<8x1xi1> to vector<8x1xi1>
      %99 = vector.broadcast %98 : vector<8x1xi1> to vector<8x32xi1>
      %100 = arith.select %99, %94, %71 : vector<8x32xi1>, vector<8x32xf32>
      %101 = vector.shape_cast %97 : vector<8x1xi1> to vector<8x1xi1>
      %102 = vector.broadcast %101 : vector<8x1xi1> to vector<8x32xi1>
      %103 = arith.select %102, %92, %74 : vector<8x32xi1>, vector<8x32xf32>
      %c3_i32 = arith.constant 3 : i32
      %104 = arith.index_cast %c3_i32 : i32 to index
      %c0_24 = arith.constant 0 : index
      %c0_25 = arith.constant 0 : index
      %105 = vector.load %arg4[%104, %c0_24, %c0_25] : memref<8x8x128xf32, #tpu.memory_space<vmem>>, vector<1x8x128xf32>
      %106 = vector.shape_cast %105 : vector<1x8x128xf32> to vector<8x128xf32>
      %cst_26 = arith.constant dense<0.000000e+00> : vector<8x128xf32>
      %107 = tpu.matmul %100, %14, %cst_26 {dimension_numbers = #tpu.dot_dimension_numbers<[1], [0], [0], [1], [0, 0, 1, 1], [], []>} : vector<8x32xf32>, vector<32x128xf32>, vector<8x128xf32> -> vector<8x128xf32>
      %108 = arith.addf %106, %107 : vector<8x128xf32>
      %109 = arith.negf %108 : vector<8x128xf32>
      %110 = math.exp %109 : vector<8x128xf32>
      %cst_27 = arith.constant 1.000000e+00 : f32
      %111 = vector.broadcast %cst_27 : f32 to vector<8x128xf32>
      %112 = arith.addf %111, %110 : vector<8x128xf32>
      %113 = arith.divf %111, %112 : vector<8x128xf32>
      %114 = vector.extract_strided_slice %113 {offsets = [0, 0], sizes = [8, 32], strides = [1, 1]} : vector<8x128xf32> to vector<8x32xf32>
      %115 = vector.extract_strided_slice %113 {offsets = [0, 32], sizes = [8, 32], strides = [1, 1]} : vector<8x128xf32> to vector<8x32xf32>
      %116 = vector.extract_strided_slice %113 {offsets = [0, 96], sizes = [8, 32], strides = [1, 1]} : vector<8x128xf32> to vector<8x32xf32>
      %117 = vector.extract_strided_slice %108 {offsets = [0, 64], sizes = [8, 32], strides = [1, 1]} : vector<8x128xf32> to vector<8x32xf32>
      %118 = math.tanh %117 : vector<8x32xf32>
      %119 = arith.mulf %115, %103 : vector<8x32xf32>
      %120 = arith.mulf %114, %118 : vector<8x32xf32>
      %121 = arith.addf %119, %120 : vector<8x32xf32>
      %122 = math.tanh %121 : vector<8x32xf32>
      %123 = arith.mulf %116, %122 : vector<8x32xf32>
      %124 = arith.addi %3, %c3_i32 : i32
      %125 = vector.broadcast %124 : i32 to vector<8x1xi32>
      %126 = arith.cmpi slt, %125, %13 : vector<8x1xi32>
      %127 = vector.shape_cast %126 : vector<8x1xi1> to vector<8x1xi1>
      %128 = vector.broadcast %127 : vector<8x1xi1> to vector<8x32xi1>
      %129 = arith.select %128, %123, %100 : vector<8x32xi1>, vector<8x32xf32>
      %130 = vector.shape_cast %126 : vector<8x1xi1> to vector<8x1xi1>
      %131 = vector.broadcast %130 : vector<8x1xi1> to vector<8x32xi1>
      %132 = arith.select %131, %121, %103 : vector<8x32xi1>, vector<8x32xf32>
      %c4_i32 = arith.constant 4 : i32
      %133 = arith.index_cast %c4_i32 : i32 to index
      %c0_28 = arith.constant 0 : index
      %c0_29 = arith.constant 0 : index
      %134 = vector.load %arg4[%133, %c0_28, %c0_29] : memref<8x8x128xf32, #tpu.memory_space<vmem>>, vector<1x8x128xf32>
      %135 = vector.shape_cast %134 : vector<1x8x128xf32> to vector<8x128xf32>
      %cst_30 = arith.constant dense<0.000000e+00> : vector<8x128xf32>
      %136 = tpu.matmul %129, %14, %cst_30 {dimension_numbers = #tpu.dot_dimension_numbers<[1], [0], [0], [1], [0, 0, 1, 1], [], []>} : vector<8x32xf32>, vector<32x128xf32>, vector<8x128xf32> -> vector<8x128xf32>
      %137 = arith.addf %135, %136 : vector<8x128xf32>
      %138 = arith.negf %137 : vector<8x128xf32>
      %139 = math.exp %138 : vector<8x128xf32>
      %cst_31 = arith.constant 1.000000e+00 : f32
      %140 = vector.broadcast %cst_31 : f32 to vector<8x128xf32>
      %141 = arith.addf %140, %139 : vector<8x128xf32>
      %142 = arith.divf %140, %141 : vector<8x128xf32>
      %143 = vector.extract_strided_slice %142 {offsets = [0, 0], sizes = [8, 32], strides = [1, 1]} : vector<8x128xf32> to vector<8x32xf32>
      %144 = vector.extract_strided_slice %142 {offsets = [0, 32], sizes = [8, 32], strides = [1, 1]} : vector<8x128xf32> to vector<8x32xf32>
      %145 = vector.extract_strided_slice %142 {offsets = [0, 96], sizes = [8, 32], strides = [1, 1]} : vector<8x128xf32> to vector<8x32xf32>
      %146 = vector.extract_strided_slice %137 {offsets = [0, 64], sizes = [8, 32], strides = [1, 1]} : vector<8x128xf32> to vector<8x32xf32>
      %147 = math.tanh %146 : vector<8x32xf32>
      %148 = arith.mulf %144, %132 : vector<8x32xf32>
      %149 = arith.mulf %143, %147 : vector<8x32xf32>
      %150 = arith.addf %148, %149 : vector<8x32xf32>
      %151 = math.tanh %150 : vector<8x32xf32>
      %152 = arith.mulf %145, %151 : vector<8x32xf32>
      %153 = arith.addi %3, %c4_i32 : i32
      %154 = vector.broadcast %153 : i32 to vector<8x1xi32>
      %155 = arith.cmpi slt, %154, %13 : vector<8x1xi32>
      %156 = vector.shape_cast %155 : vector<8x1xi1> to vector<8x1xi1>
      %157 = vector.broadcast %156 : vector<8x1xi1> to vector<8x32xi1>
      %158 = arith.select %157, %152, %129 : vector<8x32xi1>, vector<8x32xf32>
      %159 = vector.shape_cast %155 : vector<8x1xi1> to vector<8x1xi1>
      %160 = vector.broadcast %159 : vector<8x1xi1> to vector<8x32xi1>
      %161 = arith.select %160, %150, %132 : vector<8x32xi1>, vector<8x32xf32>
      %c5_i32 = arith.constant 5 : i32
      %162 = arith.index_cast %c5_i32 : i32 to index
      %c0_32 = arith.constant 0 : index
      %c0_33 = arith.constant 0 : index
      %163 = vector.load %arg4[%162, %c0_32, %c0_33] : memref<8x8x128xf32, #tpu.memory_space<vmem>>, vector<1x8x128xf32>
      %164 = vector.shape_cast %163 : vector<1x8x128xf32> to vector<8x128xf32>
      %cst_34 = arith.constant dense<0.000000e+00> : vector<8x128xf32>
      %165 = tpu.matmul %158, %14, %cst_34 {dimension_numbers = #tpu.dot_dimension_numbers<[1], [0], [0], [1], [0, 0, 1, 1], [], []>} : vector<8x32xf32>, vector<32x128xf32>, vector<8x128xf32> -> vector<8x128xf32>
      %166 = arith.addf %164, %165 : vector<8x128xf32>
      %167 = arith.negf %166 : vector<8x128xf32>
      %168 = math.exp %167 : vector<8x128xf32>
      %cst_35 = arith.constant 1.000000e+00 : f32
      %169 = vector.broadcast %cst_35 : f32 to vector<8x128xf32>
      %170 = arith.addf %169, %168 : vector<8x128xf32>
      %171 = arith.divf %169, %170 : vector<8x128xf32>
      %172 = vector.extract_strided_slice %171 {offsets = [0, 0], sizes = [8, 32], strides = [1, 1]} : vector<8x128xf32> to vector<8x32xf32>
      %173 = vector.extract_strided_slice %171 {offsets = [0, 32], sizes = [8, 32], strides = [1, 1]} : vector<8x128xf32> to vector<8x32xf32>
      %174 = vector.extract_strided_slice %171 {offsets = [0, 96], sizes = [8, 32], strides = [1, 1]} : vector<8x128xf32> to vector<8x32xf32>
      %175 = vector.extract_strided_slice %166 {offsets = [0, 64], sizes = [8, 32], strides = [1, 1]} : vector<8x128xf32> to vector<8x32xf32>
      %176 = math.tanh %175 : vector<8x32xf32>
      %177 = arith.mulf %173, %161 : vector<8x32xf32>
      %178 = arith.mulf %172, %176 : vector<8x32xf32>
      %179 = arith.addf %177, %178 : vector<8x32xf32>
      %180 = math.tanh %179 : vector<8x32xf32>
      %181 = arith.mulf %174, %180 : vector<8x32xf32>
      %182 = arith.addi %3, %c5_i32 : i32
      %183 = vector.broadcast %182 : i32 to vector<8x1xi32>
      %184 = arith.cmpi slt, %183, %13 : vector<8x1xi32>
      %185 = vector.shape_cast %184 : vector<8x1xi1> to vector<8x1xi1>
      %186 = vector.broadcast %185 : vector<8x1xi1> to vector<8x32xi1>
      %187 = arith.select %186, %181, %158 : vector<8x32xi1>, vector<8x32xf32>
      %188 = vector.shape_cast %184 : vector<8x1xi1> to vector<8x1xi1>
      %189 = vector.broadcast %188 : vector<8x1xi1> to vector<8x32xi1>
      %190 = arith.select %189, %179, %161 : vector<8x32xi1>, vector<8x32xf32>
      %c6_i32 = arith.constant 6 : i32
      %191 = arith.index_cast %c6_i32 : i32 to index
      %c0_36 = arith.constant 0 : index
      %c0_37 = arith.constant 0 : index
      %192 = vector.load %arg4[%191, %c0_36, %c0_37] : memref<8x8x128xf32, #tpu.memory_space<vmem>>, vector<1x8x128xf32>
      %193 = vector.shape_cast %192 : vector<1x8x128xf32> to vector<8x128xf32>
      %cst_38 = arith.constant dense<0.000000e+00> : vector<8x128xf32>
      %194 = tpu.matmul %187, %14, %cst_38 {dimension_numbers = #tpu.dot_dimension_numbers<[1], [0], [0], [1], [0, 0, 1, 1], [], []>} : vector<8x32xf32>, vector<32x128xf32>, vector<8x128xf32> -> vector<8x128xf32>
      %195 = arith.addf %193, %194 : vector<8x128xf32>
      %196 = arith.negf %195 : vector<8x128xf32>
      %197 = math.exp %196 : vector<8x128xf32>
      %cst_39 = arith.constant 1.000000e+00 : f32
      %198 = vector.broadcast %cst_39 : f32 to vector<8x128xf32>
      %199 = arith.addf %198, %197 : vector<8x128xf32>
      %200 = arith.divf %198, %199 : vector<8x128xf32>
      %201 = vector.extract_strided_slice %200 {offsets = [0, 0], sizes = [8, 32], strides = [1, 1]} : vector<8x128xf32> to vector<8x32xf32>
      %202 = vector.extract_strided_slice %200 {offsets = [0, 32], sizes = [8, 32], strides = [1, 1]} : vector<8x128xf32> to vector<8x32xf32>
      %203 = vector.extract_strided_slice %200 {offsets = [0, 96], sizes = [8, 32], strides = [1, 1]} : vector<8x128xf32> to vector<8x32xf32>
      %204 = vector.extract_strided_slice %195 {offsets = [0, 64], sizes = [8, 32], strides = [1, 1]} : vector<8x128xf32> to vector<8x32xf32>
      %205 = math.tanh %204 : vector<8x32xf32>
      %206 = arith.mulf %202, %190 : vector<8x32xf32>
      %207 = arith.mulf %201, %205 : vector<8x32xf32>
      %208 = arith.addf %206, %207 : vector<8x32xf32>
      %209 = math.tanh %208 : vector<8x32xf32>
      %210 = arith.mulf %203, %209 : vector<8x32xf32>
      %211 = arith.addi %3, %c6_i32 : i32
      %212 = vector.broadcast %211 : i32 to vector<8x1xi32>
      %213 = arith.cmpi slt, %212, %13 : vector<8x1xi32>
      %214 = vector.shape_cast %213 : vector<8x1xi1> to vector<8x1xi1>
      %215 = vector.broadcast %214 : vector<8x1xi1> to vector<8x32xi1>
      %216 = arith.select %215, %210, %187 : vector<8x32xi1>, vector<8x32xf32>
      %217 = vector.shape_cast %213 : vector<8x1xi1> to vector<8x1xi1>
      %218 = vector.broadcast %217 : vector<8x1xi1> to vector<8x32xi1>
      %219 = arith.select %218, %208, %190 : vector<8x32xi1>, vector<8x32xf32>
      %c7_i32 = arith.constant 7 : i32
      %220 = arith.index_cast %c7_i32 : i32 to index
      %c0_40 = arith.constant 0 : index
      %c0_41 = arith.constant 0 : index
      %221 = vector.load %arg4[%220, %c0_40, %c0_41] : memref<8x8x128xf32, #tpu.memory_space<vmem>>, vector<1x8x128xf32>
      %222 = vector.shape_cast %221 : vector<1x8x128xf32> to vector<8x128xf32>
      %cst_42 = arith.constant dense<0.000000e+00> : vector<8x128xf32>
      %223 = tpu.matmul %216, %14, %cst_42 {dimension_numbers = #tpu.dot_dimension_numbers<[1], [0], [0], [1], [0, 0, 1, 1], [], []>} : vector<8x32xf32>, vector<32x128xf32>, vector<8x128xf32> -> vector<8x128xf32>
      %224 = arith.addf %222, %223 : vector<8x128xf32>
      %225 = arith.negf %224 : vector<8x128xf32>
      %226 = math.exp %225 : vector<8x128xf32>
      %cst_43 = arith.constant 1.000000e+00 : f32
      %227 = vector.broadcast %cst_43 : f32 to vector<8x128xf32>
      %228 = arith.addf %227, %226 : vector<8x128xf32>
      %229 = arith.divf %227, %228 : vector<8x128xf32>
      %230 = vector.extract_strided_slice %229 {offsets = [0, 0], sizes = [8, 32], strides = [1, 1]} : vector<8x128xf32> to vector<8x32xf32>
      %231 = vector.extract_strided_slice %229 {offsets = [0, 32], sizes = [8, 32], strides = [1, 1]} : vector<8x128xf32> to vector<8x32xf32>
      %232 = vector.extract_strided_slice %229 {offsets = [0, 96], sizes = [8, 32], strides = [1, 1]} : vector<8x128xf32> to vector<8x32xf32>
      %233 = vector.extract_strided_slice %224 {offsets = [0, 64], sizes = [8, 32], strides = [1, 1]} : vector<8x128xf32> to vector<8x32xf32>
      %234 = math.tanh %233 : vector<8x32xf32>
      %235 = arith.mulf %231, %219 : vector<8x32xf32>
      %236 = arith.mulf %230, %234 : vector<8x32xf32>
      %237 = arith.addf %235, %236 : vector<8x32xf32>
      %238 = math.tanh %237 : vector<8x32xf32>
      %239 = arith.mulf %232, %238 : vector<8x32xf32>
      %240 = arith.addi %3, %c7_i32 : i32
      %241 = vector.broadcast %240 : i32 to vector<8x1xi32>
      %242 = arith.cmpi slt, %241, %13 : vector<8x1xi32>
      %243 = vector.shape_cast %242 : vector<8x1xi1> to vector<8x1xi1>
      %244 = vector.broadcast %243 : vector<8x1xi1> to vector<8x32xi1>
      %245 = arith.select %244, %239, %216 : vector<8x32xi1>, vector<8x32xf32>
      %246 = vector.shape_cast %242 : vector<8x1xi1> to vector<8x1xi1>
      %247 = vector.broadcast %246 : vector<8x1xi1> to vector<8x32xi1>
      %248 = arith.select %247, %237, %219 : vector<8x32xi1>, vector<8x32xf32>
      %c8_i32_44 = arith.constant 8 : i32
      %c0_45 = arith.constant 0 : index
      %c0_46 = arith.constant 0 : index
      %249 = vector.load %arg9[%c0_45, %c0_46] : memref<8x32xf32, #tpu.memory_space<vmem>>, vector<8x32xf32>
      tpu.vector_store %arg9[%c0_45, %c0_46], %245 {strides = array<i32>} : memref<8x32xf32, #tpu.memory_space<vmem>>, vector<8x32xf32>,
      %c0_47 = arith.constant 0 : index
      %c0_48 = arith.constant 0 : index
      %250 = vector.load %arg10[%c0_47, %c0_48] : memref<8x32xf32, #tpu.memory_space<vmem>>, vector<8x32xf32>
      tpu.vector_store %arg10[%c0_47, %c0_48], %248 {strides = array<i32>} : memref<8x32xf32, #tpu.memory_space<vmem>>, vector<8x32xf32>,
    } else {
    }
    %c0_i32_3 = arith.constant 0 : i32
    %10 = arith.cmpi eq, %arg1, %c0_i32_3 : i32
    %11 = arith.extui %10 : i1 to i32
    %c0_i32_4 = arith.constant 0 : i32
    %12 = arith.cmpi ne, %11, %c0_i32_4 : i32
    scf.if %12 {
      %c0 = arith.constant 0 : index
      %c0_5 = arith.constant 0 : index
      %13 = vector.load %arg9[%c0, %c0_5] : memref<8x32xf32, #tpu.memory_space<vmem>>, vector<8x32xf32>
      %c0_6 = arith.constant 0 : index
      %c0_7 = arith.constant 0 : index
      %14 = vector.load %arg6[%c0_6, %c0_7] : memref<32x128xf32, #tpu.memory_space<vmem>>, vector<32x128xf32>
      %cst = arith.constant dense<0.000000e+00> : vector<8x128xf32>
      %15 = tpu.matmul %13, %14, %cst {dimension_numbers = #tpu.dot_dimension_numbers<[1], [0], [0], [1], [0, 0, 1, 1], [], []>} : vector<8x32xf32>, vector<32x128xf32>, vector<8x128xf32> -> vector<8x128xf32>
      %c0_8 = arith.constant 0 : index
      %c0_9 = arith.constant 0 : index
      %16 = vector.load %arg7[%c0_8, %c0_9] : memref<1x128xf32, #tpu.memory_space<vmem>>, vector<1x128xf32>
      %17 = vector.broadcast %16 : vector<1x128xf32> to vector<8x128xf32>
      %18 = arith.addf %15, %17 : vector<8x128xf32>
      %c0_10 = arith.constant 0 : index
      %c0_11 = arith.constant 0 : index
      %19 = vector.load %arg8[%c0_10, %c0_11] : memref<8x128xf32, #tpu.memory_space<vmem>>, vector<8x128xf32>
      tpu.vector_store %arg8[%c0_10, %c0_11], %18 {strides = array<i32>} : memref<8x128xf32, #tpu.memory_space<vmem>>, vector<8x128xf32>,
    } else {
    }
    return
  }
  func.func @transform_0(%arg0: i32, %arg1: i32, %arg2: memref<8xi32, #tpu.memory_space<smem>>) -> (i32, i32) {
    %c0_i32 = arith.constant 0 : i32
    %c0_i32_0 = arith.constant 0 : i32
    return %arg0, %c0_i32 : i32, i32
  }
  func.func @transform_1(%arg0: i32, %arg1: i32, %arg2: memref<8xi32, #tpu.memory_space<smem>>) -> (i32, i32, i32) {
    %c0_i32 = arith.constant 0 : i32
    %c0_i32_0 = arith.constant 0 : i32
    return %arg1, %arg0, %c0_i32 : i32, i32, i32
  }
  func.func @transform_2(%arg0: i32, %arg1: i32, %arg2: memref<8xi32, #tpu.memory_space<smem>>) -> (i32, i32) {
    %c0_i32 = arith.constant 0 : i32
    %c0_i32_0 = arith.constant 0 : i32
    %c0_i32_1 = arith.constant 0 : i32
    return %c0_i32, %c0_i32_0 : i32, i32
  }
  func.func @transform_3(%arg0: i32, %arg1: i32, %arg2: memref<8xi32, #tpu.memory_space<smem>>) -> (i32, i32) {
    %c0_i32 = arith.constant 0 : i32
    %c0_i32_0 = arith.constant 0 : i32
    %c0_i32_1 = arith.constant 0 : i32
    return %c0_i32, %c0_i32_0 : i32, i32
  }
  func.func @transform_4(%arg0: i32, %arg1: i32, %arg2: memref<8xi32, #tpu.memory_space<smem>>) -> (i32, i32) {
    %c0_i32 = arith.constant 0 : i32
    %c0_i32_0 = arith.constant 0 : i32
    %c0_i32_1 = arith.constant 0 : i32
    return %c0_i32, %c0_i32_0 : i32, i32
  }
  func.func @transform_5(%arg0: i32, %arg1: i32, %arg2: memref<8xi32, #tpu.memory_space<smem>>) -> (i32, i32) {
    %c0_i32 = arith.constant 0 : i32
    %c0_i32_0 = arith.constant 0 : i32
    return %arg0, %c0_i32 : i32, i32
  }
}

</mosaic_0001>

<llo_original>
// kernel: tpu_custom_call.1
$region0: #{tpu_custom_call.1}
  #allocation0 [shape = 'u32[]', space=smem, size = 0x4, offset = 0x4, fixed_abs, tag = 'smem constant byte address 0x4 - core index']
  #allocation1 [shape = 'u32[72,128]{1,0:T(1,128)}', space=vmem, size = 0x9000, scoped, tag = 'internal scratch']
  #allocation2 [shape = 'f32[8,32]{1,0:T(8,128)}', space=vmem, size = 0x1000, scoped, tag = 'scratch operand']
  #allocation3 [shape = 'f32[8,32]{1,0:T(8,128)}', space=vmem, size = 0x1000, scoped, tag = 'scratch operand']
  #allocation4 [shape = 's32[1]{0}', space=sflag, size = 0x4, scoped, tag = 'scoped memory for tpu_custom_call.1']
  #allocation5 [shape = 'u8[512]{0}', space=smem, size = 0x200, scoped, tag = 'prefetched SMEM operand 0']
  %s0 = inlined_call_operand.vmem [shape: s32[8], index: 0, kind: input, shape index: {}]
  %s1 = inlined_call_operand.vmem [shape: s32[8,1], index: 1, kind: input, shape index: {}]
  %s2 = inlined_call_operand.hbm [shape: f32[8,8,128], index: 2, kind: input, shape index: {}]
  %s3 = inlined_call_operand.hbm [shape: f32[32,128], index: 3, kind: input, shape index: {}]
  %s4 = inlined_call_operand.hbm [shape: f32[32,128], index: 4, kind: input, shape index: {}]
  %s5 = inlined_call_operand.vmem [shape: f32[1,128], index: 5, kind: input, shape index: {}]
  %s6 = inlined_call_operand.hbm [shape: f32[8,128], index: 6, kind: output, shape index: {}]
  %s7 = sld [smem:[#allocation0]]
  $region54: #{tpu_custom_call.1} parent=0
    _
  %s9 = ssub.s32 1, %s7
  %s10 = scalar_select 0, %s9, %s7
  %s12 = sshll.u32 %s0, 4
  %s13 = int_to_ptr.vmem [resolvable:$true] %s12
  %15 = dma.vmem_to_smem %s13, 16, [#allocation5], [#allocation4]
  %17 = dma.done [#allocation4], 16
  %18 = sfence
  $region1: #{tpu_custom_call.1} parent=0
    #allocation6 [shape = 'u8[32768]{0}', space=vmem, size = 0x8000, scoped, tag = 'input window, operand 2, single buffered']
    #allocation7 [shape = 's32[1]{0}', space=sflag, size = 0x4, scoped, tag = 'scoped memory for tpu_custom_call.1']
    #allocation8 [shape = 's32[1]{0}', space=sflag, size = 0x4, scoped, tag = 'scoped memory for tpu_custom_call.1']
    #allocation9 [shape = 'u8[16384]{0}', space=vmem, size = 0x4000, scoped, tag = 'input window, operand 3, single buffered']
    #allocation10 [shape = 's32[1]{0}', space=sflag, size = 0x4, scoped, tag = 'scoped memory for tpu_custom_call.1']
    #allocation11 [shape = 'u8[16384]{0}', space=vmem, size = 0x4000, scoped, tag = 'input window, operand 4, single buffered']
    #allocation12 [shape = 'u8[4096]{0}', space=vmem, size = 0x1000, scoped, tag = 'output window, operand 0, single buffered']
    %19 = vsyncpa [#allocation7], 0
    %20 = vsyncpa [#allocation10], 0
    %21 = vsyncpa [#allocation8], 0
    // Predicated region
    $region2: #{tpu_custom_call.1} parent=1 // pred_check
      _
    $region3: #{tpu_custom_call.1} parent=1 // pred_check_branch
      %23 = sbr.rel (0) target = $region5
    $region4: #{tpu_custom_call.1} parent=1 // pred_region
      _
    $region5: #{tpu_custom_call.1} parent=1 // pred_fallthru
      _
    // Predicated region
    $region6: #{tpu_custom_call.1} parent=1 // pred_check
      _
    $region7: #{tpu_custom_call.1} parent=1 // pred_check_branch
      %25 = sbr.rel (0) target = $region9
    $region8: #{tpu_custom_call.1} parent=1 // pred_region
      %27 = vsyncadd [#allocation7], 0
      %s28 = sshll.u32 %s2, 4
      %s29 = int_to_ptr.hbm [resolvable:$true] %s28
      %s30 = sshll.u32 [#allocation6], 4
      %s31 = int_to_ptr.vmem [resolvable:$true] %s30
      %36 = dma.hbm_to_vmem [thread:$0]  %s29, 1024, %s31, [#allocation7], 128, 128, 8
    $region9: #{tpu_custom_call.1} parent=1 // pred_fallthru
      _
    // Predicated region
    $region10: #{tpu_custom_call.1} parent=1 // pred_check
      _
    $region11: #{tpu_custom_call.1} parent=1 // pred_check_branch
      %38 = sbr.rel (0) target = $region13
    $region12: #{tpu_custom_call.1} parent=1 // pred_region
      %40 = vsyncadd [#allocation10], 0
      %s41 = sshll.u32 %s3, 4
      %s42 = int_to_ptr.hbm [resolvable:$true] %s41
      %s43 = sshll.u32 [#allocation9], 4
      %s44 = int_to_ptr.vmem [resolvable:$true] %s43
      %49 = dma.hbm_to_vmem [thread:$0]  %s42, 512, %s44, [#allocation10], 128, 128, 8
    $region13: #{tpu_custom_call.1} parent=1 // pred_fallthru
      _
    // Predicated region
    $region14: #{tpu_custom_call.1} parent=1 // pred_check
      _
    $region15: #{tpu_custom_call.1} parent=1 // pred_check_branch
      %51 = sbr.rel (0) target = $region17
    $region16: #{tpu_custom_call.1} parent=1 // pred_region
      %53 = vsyncadd [#allocation10], 0
      %s54 = sshll.u32 %s4, 4
      %s55 = int_to_ptr.hbm [resolvable:$true] %s54
      %s56 = sshll.u32 [#allocation11], 4
      %s57 = int_to_ptr.vmem [resolvable:$true] %s56
      %62 = dma.hbm_to_vmem [thread:$0]  %s55, 512, %s57, [#allocation10], 128, 128, 8
    $region17: #{tpu_custom_call.1} parent=1 // pred_fallthru
      _
    // Predicated region
    $region18: #{tpu_custom_call.1} parent=1 // pred_check
      _
    $region19: #{tpu_custom_call.1} parent=1 // pred_check_branch
      %64 = sbr.rel (0) target = $region21
    $region20: #{tpu_custom_call.1} parent=1 // pred_region
      _
    $region21: #{tpu_custom_call.1} parent=1 // pred_fallthru
      _
    // Predicated region
    $region22: #{tpu_custom_call.1} parent=1 // pred_check
      _
    $region23: #{tpu_custom_call.1} parent=1 // pred_check_branch
      %66 = sbr.rel (0) target = $region25
    $region24: #{tpu_custom_call.1} parent=1 // pred_region
      %68 = dma.done [#allocation7], 1024
    $region25: #{tpu_custom_call.1} parent=1 // pred_fallthru
      _
    // Predicated region
    $region26: #{tpu_custom_call.1} parent=1 // pred_check
      _
    $region27: #{tpu_custom_call.1} parent=1 // pred_check_branch
      %70 = sbr.rel (0) target = $region29
    $region28: #{tpu_custom_call.1} parent=1 // pred_region
      %72 = dma.done [#allocation10], 512
    $region29: #{tpu_custom_call.1} parent=1 // pred_fallthru
      _
    // Predicated region
    $region30: #{tpu_custom_call.1} parent=1 // pred_check
      _
    $region31: #{tpu_custom_call.1} parent=1 // pred_check_branch
      %74 = sbr.rel (0) target = $region33
    $region32: #{tpu_custom_call.1} parent=1 // pred_region
      %76 = dma.done [#allocation10], 512
    $region33: #{tpu_custom_call.1} parent=1 // pred_fallthru
      _
    %p77 = scmp.eq.s32.totalorder 0, 0
    // Predicated region
    $region34: #{tpu_custom_call.1} parent=1 // pred_check
      %p78 = pneg %p77
    $region35: #{tpu_custom_call.1} parent=1 // pred_check_branch
      %80 = sbr.rel (%p78) target = $region37
    $region36: #{tpu_custom_call.1} parent=1 // pred_region
      %vm81 = vcmask 261120
      %82 = vst.msk [vmem:[#allocation2] sm:$0xff] %vm81, 0.0
      %83 = vst.msk [vmem:[#allocation3] sm:$0xff] %vm81, 0.0
    $region37: #{tpu_custom_call.1} parent=1 // pred_fallthru
      _
    %s84 = smul.u32 0, 8
    %s85 = smul.u32 0, 8
    %s86 = sld [smem:[#allocation5 + %s85]]
    %p87 = scmp.lt.s32.totalorder %s84, %s86
    // Predicated region
    $region38: #{tpu_custom_call.1} parent=1 // pred_check
      %p88 = pneg %p87
    $region39: #{tpu_custom_call.1} parent=1 // pred_check_branch
      %90 = sbr.rel (%p88) target = $region41
    $region40: #{tpu_custom_call.1} parent=1 // pred_region
      %v91 = vld [vmem:[%s1] sm:$0xff]
      %v92 = vld [vmem:[#allocation9] sm:$0xff]
      %v93 = vld [vmem:[#allocation9 + $0x8] sm:$0xff]
      %v94 = vld [vmem:[#allocation9 + $0x10] sm:$0xff]
      %v95 = vld [vmem:[#allocation9 + $0x18] sm:$0xff]
      %v96 = vld [vmem:[#allocation2] sm:$0xff]
      %v97 = vld [vmem:[#allocation3] sm:$0xff]
      %v98 = vld [vmem:[#allocation6] sm:$0xff]
      %vm99 = vcmask 261120
      %v101 = vsel %vm99, %v96, 0
      %103 = vmatpush.msra.mxu0 0.0
      %104 = vmatpush.msra.mxu0 0.0
      %105 = vmatpush.msra.mxu0 0.0
      %106 = vmatpush.msra.mxu0 0.0
      %107 = vmatpush.msra.mxu0 0.0
      %108 = vmatpush.msra.mxu0 0.0
      %109 = vmatpush.msra.mxu0 0.0
      %110 = vmatpush.msra.mxu0 0.0
      %111 = vmatpush.msra.mxu0 0.0
      %112 = vmatpush.msra.mxu0 0.0
      %113 = vmatpush.msra.mxu0 0.0
      %114 = vmatpush.msra.mxu0 0.0
      %115 = vmatpush.msra.mxu0 %v95
      %116 = vmatpush.msra.mxu0 %v94
      %117 = vmatpush.msra.mxu0 %v93
      %118 = vmatpush.msra.mxu0 %v92
      %119 = vmatmul.f32.gmra.mxu0 %v101
      %v120 = vpop.f32.mrf.mxu0
      %v121 = vadd.f32 0.0, %v120
      %122 = vdwg.mxu0
      %v123 = vadd.f32 %v98, %v121
      %v124 = vxor.u32 %v123, 2147483648
      %v125 = vmul.f32 %v124, 1.442695
      %v126 = vpow.pop %v125
      %v127 = vadd.f32 %v126, 1.0
      %v128 = vrcp.pop %v127
      %v129 = vmul.f32 %v127, %v128
      %v130 = vsub.f32 1.0, %v129
      %v131 = vmul.f32 %v128, %v130
      %v132 = vadd.f32 %v128, %v131
      %vm133 = vweird.f32 %v127
      %vm134 = vweird.f32 %v128
      %vm135 = vmor %vm133, %vm134
      %v136 = vsel %vm135, %v128, %v132
      %v137 = vand.u32 2147483647, %v127
      %vm138 = vcmp.eq.f32.partialorder %v137, 8.507059e+37
      %v139 = vand.u32 %v127, 2147483648
      %v140 = vor.u32 1.1754944e-38, %v139
      %v141 = vsel %vm138, %v140, %v136
      %v142 = vmul.f32 1.0, %v141
      %v143 = vtanh.pop %v123
      %145 = vrot.lane.b32.xlu0 %v97, 32
      %v146 = vpop.permute.xlu0 %145
      %v148 = vmul.f32 %v142, %v146
      %150 = vrot.lane.b32.xlu0 %v143, 64
      %v151 = vpop.permute.xlu0 %150
      %v153 = vmul.f32 %v142, %v151
      %155 = vrot.lane.b32.xlu0 %v153, 32
      %v156 = vpop.permute.xlu0 %155
      %v158 = vadd.f32 %v148, %v156
      %v159 = vtanh.pop %v158
      %161 = vrot.lane.b32.xlu0 %v159, 64
      %v162 = vpop.permute.xlu0 %161
      %v164 = vmul.f32 %v142, %v162
      %v165 = vstv %s84
      %vm166 = vcmp.lt.s32.totalorder %v165, %v91
      %v167 = vsel %vm166, 1, 0
      %168 = vset.pattern.permute.xlu0 0
      %169 = vperm.xlu0 %168, %v167
      %v170 = vpop.permute.xlu0 %169
      %vm171 = vcmp.eq.s32.totalorder %v170, 1
      %172 = vrot.lane.b32.xlu0 %v96, 96
      %v173 = vpop.permute.xlu0 %172
      %v175 = vsel %vm171, %v164, %v173
      %v176 = vsel %vm171, %v158, %v146
      %s177 = scalar_lea.vmem [#allocation6], 8
      %v178 = vld [vmem:[%s177] sm:$0xff]
      %180 = vrot.lane.b32.xlu0 %v175, 32
      %v181 = vpop.permute.xlu0 %180
      %v182 = vsel %vm99, %v181, 0
      %184 = vmatpush.msra.mxu0 0.0
      %185 = vmatpush.msra.mxu0 0.0
      %186 = vmatpush.msra.mxu0 0.0
      %187 = vmatpush.msra.mxu0 0.0
      %188 = vmatpush.msra.mxu0 0.0
      %189 = vmatpush.msra.mxu0 0.0
      %190 = vmatpush.msra.mxu0 0.0
      %191 = vmatpush.msra.mxu0 0.0
      %192 = vmatpush.msra.mxu0 0.0
      %193 = vmatpush.msra.mxu0 0.0
      %194 = vmatpush.msra.mxu0 0.0
      %195 = vmatpush.msra.mxu0 0.0
      %196 = vmatpush.msra.mxu0 %v95
      %197 = vmatpush.msra.mxu0 %v94
      %198 = vmatpush.msra.mxu0 %v93
      %199 = vmatpush.msra.mxu0 %v92
      %200 = vmatmul.f32.gmra.mxu0 %v182
      %v201 = vpop.f32.mrf.mxu0
      %v202 = vadd.f32 0.0, %v201
      %203 = vdwg.mxu0
      %v204 = vadd.f32 %v178, %v202
      %v205 = vxor.u32 %v204, 2147483648
      %v206 = vmul.f32 %v205, 1.442695
      %v207 = vpow.pop %v206
      %v208 = vadd.f32 %v207, 1.0
      %v209 = vrcp.pop %v208
      %v210 = vmul.f32 %v208, %v209
      %v211 = vsub.f32 1.0, %v210
      %v212 = vmul.f32 %v209, %v211
      %v213 = vadd.f32 %v209, %v212
      %vm214 = vweird.f32 %v208
      %vm215 = vweird.f32 %v209
      %vm216 = vmor %vm214, %vm215
      %v217 = vsel %vm216, %v209, %v213
      %v218 = vand.u32 2147483647, %v208
      %vm219 = vcmp.eq.f32.partialorder %v218, 8.507059e+37
      %v220 = vand.u32 %v208, 2147483648
      %v221 = vor.u32 1.1754944e-38, %v220
      %v222 = vsel %vm219, %v221, %v217
      %v223 = vmul.f32 1.0, %v222
      %v224 = vtanh.pop %v204
      %v225 = vmul.f32 %v223, %v176
      %227 = vrot.lane.b32.xlu0 %v224, 64
      %v228 = vpop.permute.xlu0 %227
      %v230 = vmul.f32 %v223, %v228
      %232 = vrot.lane.b32.xlu0 %v230, 32
      %v233 = vpop.permute.xlu0 %232
      %v235 = vadd.f32 %v225, %v233
      %v236 = vtanh.pop %v235
      %238 = vrot.lane.b32.xlu0 %v236, 64
      %v239 = vpop.permute.xlu0 %238
      %v241 = vmul.f32 %v223, %v239
      %s242 = sadd.s32 %s84, 1
      %v243 = vstv %s242
      %vm244 = vcmp.lt.s32.totalorder %v243, %v91
      %v245 = vsel %vm244, 1, 0
      %246 = vset.pattern.permute.xlu0 0
      %247 = vperm.xlu0 %246, %v245
      %v248 = vpop.permute.xlu0 %247
      %vm249 = vcmp.eq.s32.totalorder %v248, 1
      %v250 = vsel %vm249, %v241, %v175
      %v251 = vsel %vm249, %v235, %v176
      %s252 = scalar_lea.vmem [#allocation6], 16
      %v253 = vld [vmem:[%s252] sm:$0xff]
      %255 = vrot.lane.b32.xlu0 %v250, 32
      %v256 = vpop.permute.xlu0 %255
      %v257 = vsel %vm99, %v256, 0
      %259 = vmatpush.msra.mxu0 0.0
      %260 = vmatpush.msra.mxu0 0.0
      %261 = vmatpush.msra.mxu0 0.0
      %262 = vmatpush.msra.mxu0 0.0
      %263 = vmatpush.msra.mxu0 0.0
      %264 = vmatpush.msra.mxu0 0.0
      %265 = vmatpush.msra.mxu0 0.0
      %266 = vmatpush.msra.mxu0 0.0
      %267 = vmatpush.msra.mxu0 0.0
      %268 = vmatpush.msra.mxu0 0.0
      %269 = vmatpush.msra.mxu0 0.0
      %270 = vmatpush.msra.mxu0 0.0
      %271 = vmatpush.msra.mxu0 %v95
      %272 = vmatpush.msra.mxu0 %v94
      %273 = vmatpush.msra.mxu0 %v93
      %274 = vmatpush.msra.mxu0 %v92
      %275 = vmatmul.f32.gmra.mxu0 %v257
      %v276 = vpop.f32.mrf.mxu0
      %v277 = vadd.f32 0.0, %v276
      %278 = vdwg.mxu0
      %v279 = vadd.f32 %v253, %v277
      %v280 = vxor.u32 %v279, 2147483648
      %v281 = vmul.f32 %v280, 1.442695
      %v282 = vpow.pop %v281
      %v283 = vadd.f32 %v282, 1.0
      %v284 = vrcp.pop %v283
      %v285 = vmul.f32 %v283, %v284
      %v286 = vsub.f32 1.0, %v285
      %v287 = vmul.f32 %v284, %v286
      %v288 = vadd.f32 %v284, %v287
      %vm289 = vweird.f32 %v283
      %vm290 = vweird.f32 %v284
      %vm291 = vmor %vm289, %vm290
      %v292 = vsel %vm291, %v284, %v288
      %v293 = vand.u32 2147483647, %v283
      %vm294 = vcmp.eq.f32.partialorder %v293, 8.507059e+37
      %v295 = vand.u32 %v283, 2147483648
      %v296 = vor.u32 1.1754944e-38, %v295
      %v297 = vsel %vm294, %v296, %v292
      %v298 = vmul.f32 1.0, %v297
      %v299 = vtanh.pop %v279
      %v300 = vmul.f32 %v298, %v251
      %302 = vrot.lane.b32.xlu0 %v299, 64
      %v303 = vpop.permute.xlu0 %302
      %v305 = vmul.f32 %v298, %v303
      %307 = vrot.lane.b32.xlu0 %v305, 32
      %v308 = vpop.permute.xlu0 %307
      %v310 = vadd.f32 %v300, %v308
      %v311 = vtanh.pop %v310
      %313 = vrot.lane.b32.xlu0 %v311, 64
      %v314 = vpop.permute.xlu0 %313
      %v316 = vmul.f32 %v298, %v314
      %s317 = sadd.s32 %s84, 2
      %v318 = vstv %s317
      %vm319 = vcmp.lt.s32.totalorder %v318, %v91
      %v320 = vsel %vm319, 1, 0
      %321 = vset.pattern.permute.xlu0 0
      %322 = vperm.xlu0 %321, %v320
      %v323 = vpop.permute.xlu0 %322
      %vm324 = vcmp.eq.s32.totalorder %v323, 1
      %v325 = vsel %vm324, %v316, %v250
      %v326 = vsel %vm324, %v310, %v251
      %s327 = scalar_lea.vmem [#allocation6], 24
      %v328 = vld [vmem:[%s327] sm:$0xff]
      %330 = vrot.lane.b32.xlu0 %v325, 32
      %v331 = vpop.permute.xlu0 %330
      %v332 = vsel %vm99, %v331, 0
      %334 = vmatpush.msra.mxu0 0.0
      %335 = vmatpush.msra.mxu0 0.0
      %336 = vmatpush.msra.mxu0 0.0
      %337 = vmatpush.msra.mxu0 0.0
      %338 = vmatpush.msra.mxu0 0.0
      %339 = vmatpush.msra.mxu0 0.0
      %340 = vmatpush.msra.mxu0 0.0
      %341 = vmatpush.msra.mxu0 0.0
      %342 = vmatpush.msra.mxu0 0.0
      %343 = vmatpush.msra.mxu0 0.0
      %344 = vmatpush.msra.mxu0 0.0
      %345 = vmatpush.msra.mxu0 0.0
      %346 = vmatpush.msra.mxu0 %v95
      %347 = vmatpush.msra.mxu0 %v94
      %348 = vmatpush.msra.mxu0 %v93
      %349 = vmatpush.msra.mxu0 %v92
      %350 = vmatmul.f32.gmra.mxu0 %v332
      %v351 = vpop.f32.mrf.mxu0
      %v352 = vadd.f32 0.0, %v351
      %353 = vdwg.mxu0
      %v354 = vadd.f32 %v328, %v352
      %v355 = vxor.u32 %v354, 2147483648
      %v356 = vmul.f32 %v355, 1.442695
      %v357 = vpow.pop %v356
      %v358 = vadd.f32 %v357, 1.0
      %v359 = vrcp.pop %v358
      %v360 = vmul.f32 %v358, %v359
      %v361 = vsub.f32 1.0, %v360
      %v362 = vmul.f32 %v359, %v361
      %v363 = vadd.f32 %v359, %v362
      %vm364 = vweird.f32 %v358
      %vm365 = vweird.f32 %v359
      %vm366 = vmor %vm364, %vm365
      %v367 = vsel %vm366, %v359, %v363
      %v368 = vand.u32 2147483647, %v358
      %vm369 = vcmp.eq.f32.partialorder %v368, 8.507059e+37
      %v370 = vand.u32 %v358, 2147483648
      %v371 = vor.u32 1.1754944e-38, %v370
      %v372 = vsel %vm369, %v371, %v367
      %v373 = vmul.f32 1.0, %v372
      %v374 = vtanh.pop %v354
      %v375 = vmul.f32 %v373, %v326
      %377 = vrot.lane.b32.xlu0 %v374, 64
      %v378 = vpop.permute.xlu0 %377
      %v380 = vmul.f32 %v373, %v378
      %382 = vrot.lane.b32.xlu0 %v380, 32
      %v383 = vpop.permute.xlu0 %382
      %v385 = vadd.f32 %v375, %v383
      %v386 = vtanh.pop %v385
      %388 = vrot.lane.b32.xlu0 %v386, 64
      %v389 = vpop.permute.xlu0 %388
      %v391 = vmul.f32 %v373, %v389
      %s392 = sadd.s32 %s84, 3
      %v393 = vstv %s392
      %vm394 = vcmp.lt.s32.totalorder %v393, %v91
      %v395 = vsel %vm394, 1, 0
      %396 = vset.pattern.permute.xlu0 0
      %397 = vperm.xlu0 %396, %v395
      %v398 = vpop.permute.xlu0 %397
      %vm399 = vcmp.eq.s32.totalorder %v398, 1
      %v400 = vsel %vm399, %v391, %v325
      %v401 = vsel %vm399, %v385, %v326
      %s402 = scalar_lea.vmem [#allocation6], 32
      %v403 = vld [vmem:[%s402] sm:$0xff]
      %405 = vrot.lane.b32.xlu0 %v400, 32
      %v406 = vpop.permute.xlu0 %405
      %v407 = vsel %vm99, %v406, 0
      %409 = vmatpush.msra.mxu0 0.0
      %410 = vmatpush.msra.mxu0 0.0
      %411 = vmatpush.msra.mxu0 0.0
      %412 = vmatpush.msra.mxu0 0.0
      %413 = vmatpush.msra.mxu0 0.0
      %414 = vmatpush.msra.mxu0 0.0
      %415 = vmatpush.msra.mxu0 0.0
      %416 = vmatpush.msra.mxu0 0.0
      %417 = vmatpush.msra.mxu0 0.0
      %418 = vmatpush.msra.mxu0 0.0
      %419 = vmatpush.msra.mxu0 0.0
      %420 = vmatpush.msra.mxu0 0.0
      %421 = vmatpush.msra.mxu0 %v95
      %422 = vmatpush.msra.mxu0 %v94
      %423 = vmatpush.msra.mxu0 %v93
      %424 = vmatpush.msra.mxu0 %v92
      %425 = vmatmul.f32.gmra.mxu0 %v407
      %v426 = vpop.f32.mrf.mxu0
      %v427 = vadd.f32 0.0, %v426
      %428 = vdwg.mxu0
      %v429 = vadd.f32 %v403, %v427
      %v430 = vxor.u32 %v429, 2147483648
      %v431 = vmul.f32 %v430, 1.442695
      %v432 = vpow.pop %v431
      %v433 = vadd.f32 %v432, 1.0
      %v434 = vrcp.pop %v433
      %v435 = vmul.f32 %v433, %v434
      %v436 = vsub.f32 1.0, %v435
      %v437 = vmul.f32 %v434, %v436
      %v438 = vadd.f32 %v434, %v437
      %vm439 = vweird.f32 %v433
      %vm440 = vweird.f32 %v434
      %vm441 = vmor %vm439, %vm440
      %v442 = vsel %vm441, %v434, %v438
      %v443 = vand.u32 2147483647, %v433
      %vm444 = vcmp.eq.f32.partialorder %v443, 8.507059e+37
      %v445 = vand.u32 %v433, 2147483648
      %v446 = vor.u32 1.1754944e-38, %v445
      %v447 = vsel %vm444, %v446, %v442
      %v448 = vmul.f32 1.0, %v447
      %v449 = vtanh.pop %v429
      %v450 = vmul.f32 %v448, %v401
      %452 = vrot.lane.b32.xlu0 %v449, 64
      %v453 = vpop.permute.xlu0 %452
      %v455 = vmul.f32 %v448, %v453
      %457 = vrot.lane.b32.xlu0 %v455, 32
      %v458 = vpop.permute.xlu0 %457
      %v460 = vadd.f32 %v450, %v458
      %v461 = vtanh.pop %v460
      %463 = vrot.lane.b32.xlu0 %v461, 64
      %v464 = vpop.permute.xlu0 %463
      %v466 = vmul.f32 %v448, %v464
      %s467 = sadd.s32 %s84, 4
      %v468 = vstv %s467
      %vm469 = vcmp.lt.s32.totalorder %v468, %v91
      %v470 = vsel %vm469, 1, 0
      %471 = vset.pattern.permute.xlu0 0
      %472 = vperm.xlu0 %471, %v470
      %v473 = vpop.permute.xlu0 %472
      %vm474 = vcmp.eq.s32.totalorder %v473, 1
      %v475 = vsel %vm474, %v466, %v400
      %v476 = vsel %vm474, %v460, %v401
      %s477 = scalar_lea.vmem [#allocation6], 40
      %v478 = vld [vmem:[%s477] sm:$0xff]
      %480 = vrot.lane.b32.xlu0 %v475, 32
      %v481 = vpop.permute.xlu0 %480
      %v482 = vsel %vm99, %v481, 0
      %484 = vmatpush.msra.mxu0 0.0
      %485 = vmatpush.msra.mxu0 0.0
      %486 = vmatpush.msra.mxu0 0.0
      %487 = vmatpush.msra.mxu0 0.0
      %488 = vmatpush.msra.mxu0 0.0
      %489 = vmatpush.msra.mxu0 0.0
      %490 = vmatpush.msra.mxu0 0.0
      %491 = vmatpush.msra.mxu0 0.0
      %492 = vmatpush.msra.mxu0 0.0
      %493 = vmatpush.msra.mxu0 0.0
      %494 = vmatpush.msra.mxu0 0.0
      %495 = vmatpush.msra.mxu0 0.0
      %496 = vmatpush.msra.mxu0 %v95
      %497 = vmatpush.msra.mxu0 %v94
      %498 = vmatpush.msra.mxu0 %v93
      %499 = vmatpush.msra.mxu0 %v92
      %500 = vmatmul.f32.gmra.mxu0 %v482
      %v501 = vpop.f32.mrf.mxu0
      %v502 = vadd.f32 0.0, %v501
      %503 = vdwg.mxu0
      %v504 = vadd.f32 %v478, %v502
      %v505 = vxor.u32 %v504, 2147483648
      %v506 = vmul.f32 %v505, 1.442695
      %v507 = vpow.pop %v506
      %v508 = vadd.f32 %v507, 1.0
      %v509 = vrcp.pop %v508
      %v510 = vmul.f32 %v508, %v509
      %v511 = vsub.f32 1.0, %v510
      %v512 = vmul.f32 %v509, %v511
      %v513 = vadd.f32 %v509, %v512
      %vm514 = vweird.f32 %v508
      %vm515 = vweird.f32 %v509
      %vm516 = vmor %vm514, %vm515
      %v517 = vsel %vm516, %v509, %v513
      %v518 = vand.u32 2147483647, %v508
      %vm519 = vcmp.eq.f32.partialorder %v518, 8.507059e+37
      %v520 = vand.u32 %v508, 2147483648
      %v521 = vor.u32 1.1754944e-38, %v520
      %v522 = vsel %vm519, %v521, %v517
      %v523 = vmul.f32 1.0, %v522
      %v524 = vtanh.pop %v504
      %v525 = vmul.f32 %v523, %v476
      %527 = vrot.lane.b32.xlu0 %v524, 64
      %v528 = vpop.permute.xlu0 %527
      %v530 = vmul.f32 %v523, %v528
      %532 = vrot.lane.b32.xlu0 %v530, 32
      %v533 = vpop.permute.xlu0 %532
      %v535 = vadd.f32 %v525, %v533
      %v536 = vtanh.pop %v535
      %538 = vrot.lane.b32.xlu0 %v536, 64
      %v539 = vpop.permute.xlu0 %538
      %v541 = vmul.f32 %v523, %v539
      %s542 = sadd.s32 %s84, 5
      %v543 = vstv %s542
      %vm544 = vcmp.lt.s32.totalorder %v543, %v91
      %v545 = vsel %vm544, 1, 0
      %546 = vset.pattern.permute.xlu0 0
      %547 = vperm.xlu0 %546, %v545
      %v548 = vpop.permute.xlu0 %547
      %vm549 = vcmp.eq.s32.totalorder %v548, 1
      %v550 = vsel %vm549, %v541, %v475
      %v551 = vsel %vm549, %v535, %v476
      %s552 = scalar_lea.vmem [#allocation6], 48
      %v553 = vld [vmem:[%s552] sm:$0xff]
      %555 = vrot.lane.b32.xlu0 %v550, 32
      %v556 = vpop.permute.xlu0 %555
      %v557 = vsel %vm99, %v556, 0
      %559 = vmatpush.msra.mxu0 0.0
      %560 = vmatpush.msra.mxu0 0.0
      %561 = vmatpush.msra.mxu0 0.0
      %562 = vmatpush.msra.mxu0 0.0
      %563 = vmatpush.msra.mxu0 0.0
      %564 = vmatpush.msra.mxu0 0.0
      %565 = vmatpush.msra.mxu0 0.0
      %566 = vmatpush.msra.mxu0 0.0
      %567 = vmatpush.msra.mxu0 0.0
      %568 = vmatpush.msra.mxu0 0.0
      %569 = vmatpush.msra.mxu0 0.0
      %570 = vmatpush.msra.mxu0 0.0
      %571 = vmatpush.msra.mxu0 %v95
      %572 = vmatpush.msra.mxu0 %v94
      %573 = vmatpush.msra.mxu0 %v93
      %574 = vmatpush.msra.mxu0 %v92
      %575 = vmatmul.f32.gmra.mxu0 %v557
      %v576 = vpop.f32.mrf.mxu0
      %v577 = vadd.f32 0.0, %v576
      %578 = vdwg.mxu0
      %v579 = vadd.f32 %v553, %v577
      %v580 = vxor.u32 %v579, 2147483648
      %v581 = vmul.f32 %v580, 1.442695
      %v582 = vpow.pop %v581
      %v583 = vadd.f32 %v582, 1.0
      %v584 = vrcp.pop %v583
      %v585 = vmul.f32 %v583, %v584
      %v586 = vsub.f32 1.0, %v585
      %v587 = vmul.f32 %v584, %v586
      %v588 = vadd.f32 %v584, %v587
      %vm589 = vweird.f32 %v583
      %vm590 = vweird.f32 %v584
      %vm591 = vmor %vm589, %vm590
      %v592 = vsel %vm591, %v584, %v588
      %v593 = vand.u32 2147483647, %v583
      %vm594 = vcmp.eq.f32.partialorder %v593, 8.507059e+37
      %v595 = vand.u32 %v583, 2147483648
      %v596 = vor.u32 1.1754944e-38, %v595
      %v597 = vsel %vm594, %v596, %v592
      %v598 = vmul.f32 1.0, %v597
      %v599 = vtanh.pop %v579
      %v600 = vmul.f32 %v598, %v551
      %602 = vrot.lane.b32.xlu0 %v599, 64
      %v603 = vpop.permute.xlu0 %602
      %v605 = vmul.f32 %v598, %v603
      %607 = vrot.lane.b32.xlu0 %v605, 32
      %v608 = vpop.permute.xlu0 %607
      %v610 = vadd.f32 %v600, %v608
      %v611 = vtanh.pop %v610
      %613 = vrot.lane.b32.xlu0 %v611, 64
      %v614 = vpop.permute.xlu0 %613
      %v616 = vmul.f32 %v598, %v614
      %s617 = sadd.s32 %s84, 6
      %v618 = vstv %s617
      %vm619 = vcmp.lt.s32.totalorder %v618, %v91
      %v620 = vsel %vm619, 1, 0
      %621 = vset.pattern.permute.xlu0 0
      %622 = vperm.xlu0 %621, %v620
      %v623 = vpop.permute.xlu0 %622
      %vm624 = vcmp.eq.s32.totalorder %v623, 1
      %v625 = vsel %vm624, %v616, %v550
      %v626 = vsel %vm624, %v610, %v551
      %s627 = scalar_lea.vmem [#allocation6], 56
      %v628 = vld [vmem:[%s627] sm:$0xff]
      %630 = vrot.lane.b32.xlu0 %v625, 32
      %v631 = vpop.permute.xlu0 %630
      %v632 = vsel %vm99, %v631, 0
      %634 = vmatpush.msra.mxu0 0.0
      %635 = vmatpush.msra.mxu0 0.0
      %636 = vmatpush.msra.mxu0 0.0
      %637 = vmatpush.msra.mxu0 0.0
      %638 = vmatpush.msra.mxu0 0.0
      %639 = vmatpush.msra.mxu0 0.0
      %640 = vmatpush.msra.mxu0 0.0
      %641 = vmatpush.msra.mxu0 0.0
      %642 = vmatpush.msra.mxu0 0.0
      %643 = vmatpush.msra.mxu0 0.0
      %644 = vmatpush.msra.mxu0 0.0
      %645 = vmatpush.msra.mxu0 0.0
      %646 = vmatpush.msra.mxu0 %v95
      %647 = vmatpush.msra.mxu0 %v94
      %648 = vmatpush.msra.mxu0 %v93
      %649 = vmatpush.msra.mxu0 %v92
      %650 = vmatmul.f32.gmra.mxu0 %v632
      %v651 = vpop.f32.mrf.mxu0
      %v652 = vadd.f32 0.0, %v651
      %653 = vdwg.mxu0
      %v654 = vadd.f32 %v628, %v652
      %v655 = vxor.u32 %v654, 2147483648
      %v656 = vmul.f32 %v655, 1.442695
      %v657 = vpow.pop %v656
      %v658 = vadd.f32 %v657, 1.0
      %v659 = vrcp.pop %v658
      %v660 = vmul.f32 %v658, %v659
      %v661 = vsub.f32 1.0, %v660
      %v662 = vmul.f32 %v659, %v661
      %v663 = vadd.f32 %v659, %v662
      %vm664 = vweird.f32 %v658
      %vm665 = vweird.f32 %v659
      %vm666 = vmor %vm664, %vm665
      %v667 = vsel %vm666, %v659, %v663
      %v668 = vand.u32 2147483647, %v658
      %vm669 = vcmp.eq.f32.partialorder %v668, 8.507059e+37
      %v670 = vand.u32 %v658, 2147483648
      %v671 = vor.u32 1.1754944e-38, %v670
      %v672 = vsel %vm669, %v671, %v667
      %v673 = vmul.f32 1.0, %v672
      %v674 = vtanh.pop %v654
      %v675 = vmul.f32 %v673, %v626
      %677 = vrot.lane.b32.xlu0 %v674, 64
      %v678 = vpop.permute.xlu0 %677
      %v680 = vmul.f32 %v673, %v678
      %682 = vrot.lane.b32.xlu0 %v680, 32
      %v683 = vpop.permute.xlu0 %682
      %v685 = vadd.f32 %v675, %v683
      %v686 = vtanh.pop %v685
      %688 = vrot.lane.b32.xlu0 %v686, 64
      %v689 = vpop.permute.xlu0 %688
      %v691 = vmul.f32 %v673, %v689
      %s692 = sadd.s32 %s84, 7
      %v693 = vstv %s692
      %vm694 = vcmp.lt.s32.totalorder %v693, %v91
      %v695 = vsel %vm694, 1, 0
      %696 = vset.pattern.permute.xlu0 0
      %697 = vperm.xlu0 %696, %v695
      %v698 = vpop.permute.xlu0 %697
      %vm699 = vcmp.eq.s32.totalorder %v698, 1
      %v700 = vsel %vm699, %v691, %v625
      %v701 = vsel %vm699, %v685, %v626
      %703 = vrot.lane.b32.xlu0 %v700, 32
      %v704 = vpop.permute.xlu0 %703
      %706 = vst.msk [vmem:[#allocation2] sm:$0xff] %vm99, %v704
      %708 = vrot.lane.b32.xlu0 %v701, 96
      %v709 = vpop.permute.xlu0 %708
      %711 = vst.msk [vmem:[#allocation3] sm:$0xff] %vm99, %v709
    $region41: #{tpu_custom_call.1} parent=1 // pred_fallthru
      _
    // Predicated region
    $region42: #{tpu_custom_call.1} parent=1 // pred_check
      %p712 = pneg %p77
    $region43: #{tpu_custom_call.1} parent=1 // pred_check_branch
      %714 = sbr.rel (%p712) target = $region45
    $region44: #{tpu_custom_call.1} parent=1 // pred_region
      %v715 = vld [vmem:[#allocation2] sm:$0xff]
      %v716 = vld [vmem:[#allocation11] sm:$0xff]
      %v717 = vld [vmem:[#allocation11 + $0x8] sm:$0xff]
      %v718 = vld [vmem:[#allocation11 + $0x10] sm:$0xff]
      %v719 = vld [vmem:[#allocation11 + $0x18] sm:$0xff]
      %v720 = vld [vmem:[%s5] sm:$0x1]
      %v722 = vperm.slane %v720, 0
      %vm724 = vcmask 261120
      %v726 = vsel %vm724, %v715, 0
      %728 = vmatpush.msra.mxu0 0.0
      %729 = vmatpush.msra.mxu0 0.0
      %730 = vmatpush.msra.mxu0 0.0
      %731 = vmatpush.msra.mxu0 0.0
      %732 = vmatpush.msra.mxu0 0.0
      %733 = vmatpush.msra.mxu0 0.0
      %734 = vmatpush.msra.mxu0 0.0
      %735 = vmatpush.msra.mxu0 0.0
      %736 = vmatpush.msra.mxu0 0.0
      %737 = vmatpush.msra.mxu0 0.0
      %738 = vmatpush.msra.mxu0 0.0
      %739 = vmatpush.msra.mxu0 0.0
      %740 = vmatpush.msra.mxu0 %v719
      %741 = vmatpush.msra.mxu0 %v718
      %742 = vmatpush.msra.mxu0 %v717
      %743 = vmatpush.msra.mxu0 %v716
      %744 = vmatmul.f32.gmra.mxu0 %v726
      %v745 = vpop.f32.mrf.mxu0
      %v746 = vadd.f32 %v722, %v745
      %747 = vdwg.mxu0
      %748 = vst [vmem:[#allocation12] sm:$0xff] %v746
    $region45: #{tpu_custom_call.1} parent=1 // pred_fallthru
      _
    // Predicated region
    $region46: #{tpu_custom_call.1} parent=1 // pred_check
      _
    $region47: #{tpu_custom_call.1} parent=1 // pred_check_branch
      %750 = sbr.rel (0) target = $region49
    $region48: #{tpu_custom_call.1} parent=1 // pred_region
      %752 = vsyncadd [#allocation8], 0
      %s754 = sshll.u32 [#allocation12], 4
      %s755 = int_to_ptr.vmem [resolvable:$true] %s754
      %s756 = sshll.u32 %s6, 4
      %s757 = int_to_ptr.hbm [resolvable:$true] %s756
      %759 = dma.vmem_to_hbm [thread:$0]  %s755, 128, %s757, [#allocation8]
    $region49: #{tpu_custom_call.1} parent=1 // pred_fallthru
      _
    // Predicated region
    $region50: #{tpu_custom_call.1} parent=1 // pred_check
      _
    $region51: #{tpu_custom_call.1} parent=1 // pred_check_branch
      %761 = sbr.rel (0) target = $region53
    $region52: #{tpu_custom_call.1} parent=1 // pred_region
      %763 = dma.done [#allocation8], 128
    $region53: #{tpu_custom_call.1} parent=1 // pred_fallthru
      _
    %764 = vsyncpa [#allocation7], 1
    %765 = vsyncpa [#allocation10], 1
    %766 = vsyncpa [#allocation8], 1

</llo_original>
